<compile_context>
chip_gen: v7x
topology: tpu7x:2x2x1
jax: 0.10.0
libtpu: 0.0.40
codegen_flags: <defaults>
</compile_context>

<pallas_src>
import functools

import jax
import jax.numpy as jnp
from jax.experimental import pallas as pl
from jax.experimental.pallas import tpu as pltpu


def _distmult_kernel(x_ref, ew_ref, out_ref):
    # x_ref  : (B, D)   fused e1*rel embeddings (grid-invariant, resident)
    # ew_ref : (TN, D)  tile of the entity embedding table (streamed)
    # out_ref: (B, TN)  tile of the sigmoid score matrix
    scores = jax.lax.dot_general(                         # (B, TN) on the MXU
        x_ref[...], ew_ref[...],
        dimension_numbers=(((1,), (1,)), ((), ())),       # contract D with D  (x @ E^T)
        preferred_element_type=jnp.float32,               # f32 accumulation
    )
    out_ref[...] = jax.nn.sigmoid(scores).astype(out_ref.dtype)


def _round_up(x, m):
    return (x + m - 1) // m * m


@functools.partial(jax.jit, static_argnames=("tile_n", "compute_dtype"))
def distmult_forward(e1, rel, emb_e_weight, emb_rel_weight, *,
                     tile_n=2048, compute_dtype=jnp.bfloat16):
    """DistMult scoring. e1, rel: int32 (B,) or (B,1) index arrays.

    compute_dtype controls the dtype of the streamed entity table / fused
    query (bf16 halves the dominant HBM stream; MXU accumulates in f32).
    The returned predictions are always f32, shape (B, num_entities).
    """
    e1 = e1.reshape(-1)
    rel = rel.reshape(-1)

    # Embedding lookup + grid-invariant elementwise product, hoisted out of
    # the per-tile kernel body.  Dropout is identity in eval mode.
    x = (emb_e_weight[e1] * emb_rel_weight[rel]).astype(compute_dtype)   # (B, D)
    w = emb_e_weight.astype(compute_dtype)                               # (N, D)

    B, D = x.shape
    N = w.shape[0]

    # Entity-axis tiling: big lane-dense tiles; remainder handled by padding
    # the table (pad rows are zeros -> sliced off the output afterwards).
    tn = min(tile_n, _round_up(N, 128))
    n_tiles = pl.cdiv(N, tn)
    n_pad = n_tiles * tn
    if n_pad != N:
        # TODO(synk): in a real model, pre-pad the entity table once outside
        # the step instead of paying this copy per forward call.
        w = jnp.pad(w, ((0, n_pad - N), (0, 0)))

    itemsize = jnp.dtype(compute_dtype).itemsize
    cost = pl.CostEstimate(
        flops=2 * B * D * n_pad,
        transcendentals=B * n_pad,                                    # sigmoid
        bytes_accessed=n_pad * D * itemsize + B * D * itemsize + B * n_pad * 4,
    )

    out = pl.pallas_call(
        _distmult_kernel,
        out_shape=jax.ShapeDtypeStruct((B, n_pad), jnp.float32),
        grid_spec=pltpu.PrefetchScalarGridSpec(
            num_scalar_prefetch=0,
            grid=(n_tiles,),
            in_specs=[
                pl.BlockSpec((B, D), lambda j: (0, 0)),      # fused query (resident)
                pl.BlockSpec((tn, D), lambda j: (j, 0)),     # streamed table tile
            ],
            out_specs=pl.BlockSpec((B, tn), lambda j: (0, j)),
        ),
        compiler_params=pltpu.CompilerParams(
            dimension_semantics=("parallel",),   # entity tiles shard across TCs (v7x)
        ),
        cost_estimate=cost,
    )(x, w)

    return out[:, :N] if n_pad != N else out


def _xavier_normal(key, shape):
    fan_out, fan_in = shape
    std = (2.0 / (fan_in + fan_out)) ** 0.5
    return std * jax.random.normal(key, shape, dtype=jnp.float32)


def _reference(e1, rel, emb_e, emb_rel, dtype):
    x = (emb_e[e1.reshape(-1)] * emb_rel[rel.reshape(-1)]).astype(dtype)
    w = emb_e.astype(dtype)
    return jax.nn.sigmoid(jnp.dot(x, w.T, preferred_element_type=jnp.float32))


if __name__ == "__main__":
    # Small synthetic configuration consistent with the module's __init__.
    num_entities = 512
    num_relations = 32
    embedding_dim = 128
    batch = 8

    key = jax.random.PRNGKey(0)
    k_e, k_r, k_i1, k_i2 = jax.random.split(key, 4)

    emb_e = _xavier_normal(k_e, (num_entities, embedding_dim))
    emb_rel = _xavier_normal(k_r, (num_relations, embedding_dim))
    # padding_idx=0 -> row 0 of each embedding table is zero.
    emb_e = emb_e.at[0].set(0.0)
    emb_rel = emb_rel.at[0].set(0.0)

    e1 = jax.random.randint(k_i1, (batch, 1), 0, num_entities, dtype=jnp.int32)
    rel = jax.random.randint(k_i2, (batch, 1), 0, num_relations, dtype=jnp.int32)

    # 1) Default path: bf16-streamed table, single lane-dense tile.
    pred = distmult_forward(e1, rel, emb_e, emb_rel)
    jax.block_until_ready(pred)
    assert pred.shape == (batch, num_entities)
    ref_bf16 = _reference(e1, rel, emb_e, emb_rel, jnp.bfloat16)
    assert jnp.allclose(pred, ref_bf16, atol=2e-3, rtol=2e-3)

    # 2) Full-precision path vs. pure f32 reference.
    pred32 = distmult_forward(e1, rel, emb_e, emb_rel, compute_dtype=jnp.float32)
    jax.block_until_ready(pred32)
    ref32 = _reference(e1, rel, emb_e, emb_rel, jnp.float32)
    assert jnp.allclose(pred32, ref32, atol=1e-5, rtol=1e-5)

    # 3) Remainder path: entity count not a multiple of the tile -> padded grid.
    n2 = 384
    emb_e2 = emb_e[:n2]
    e1b = e1 % n2
    pred_pad = distmult_forward(e1b, rel, emb_e2, emb_rel, tile_n=256)
    jax.block_until_ready(pred_pad)
    assert pred_pad.shape == (batch, n2)
    ref_pad = _reference(e1b, rel, emb_e2, emb_rel, jnp.bfloat16)
    assert jnp.allclose(pred_pad, ref_pad, atol=2e-3, rtol=2e-3)

    print("KERNEL_OK")
</pallas_src>

<mosaic_0001>
module attributes {stable_mosaic.version = 11 : i64} {
  func.func @_distmult_kernel(%arg0: i32, %arg1: memref<8x128xbf16, #tpu.memory_space<vmem>>, %arg2: memref<512x128xbf16, #tpu.memory_space<vmem>>, %arg3: memref<8x512xf32, #tpu.memory_space<vmem>>) attributes {dimension_semantics = [#tpu.dimension_semantics<parallel>], iteration_bounds = array<i64: 1>, scalar_prefetch = 0 : i64, scratch_operands = 0 : i64, tpu.core_type = #tpu.core_type<tc>, window_params = [{pipeline_mode = #tpu.pipeline_mode<synchronous>, transform_indices = @transform_0, window_bounds = array<i64: 8, 128>}, {transform_indices = @transform_1, window_bounds = array<i64: 512, 128>}, {transform_indices = @transform_2, window_bounds = array<i64: 8, 512>}]} {
    %c0 = arith.constant 0 : index
    %c0_0 = arith.constant 0 : index
    %0 = vector.load %arg1[%c0, %c0_0] : memref<8x128xbf16, #tpu.memory_space<vmem>>, vector<8x128xbf16>
    %c0_1 = arith.constant 0 : index
    %c0_2 = arith.constant 0 : index
    %1 = vector.load %arg2[%c0_1, %c0_2] : memref<512x128xbf16, #tpu.memory_space<vmem>>, vector<512x128xbf16>
    %cst = arith.constant dense<0.000000e+00> : vector<8x512xf32>
    %2 = tpu.matmul %0, %1, %cst {dimension_numbers = #tpu.dot_dimension_numbers<[1], [1], [0], [0], [0, 0, 1, 0], [], []>} : vector<8x128xbf16>, vector<512x128xbf16>, vector<8x512xf32> -> vector<8x512xf32>
    %3 = arith.negf %2 : vector<8x512xf32>
    %4 = math.exp %3 : vector<8x512xf32>
    %cst_3 = arith.constant 1.000000e+00 : f32
    %5 = vector.broadcast %cst_3 : f32 to vector<8x512xf32>
    %6 = arith.addf %5, %4 : vector<8x512xf32>
    %7 = arith.divf %5, %6 : vector<8x512xf32>
    %c0_4 = arith.constant 0 : index
    %c0_5 = arith.constant 0 : index
    %8 = vector.load %arg3[%c0_4, %c0_5] : memref<8x512xf32, #tpu.memory_space<vmem>>, vector<8x512xf32>
    tpu.vector_store %arg3[%c0_4, %c0_5], %7 {strides = array<i32>} : memref<8x512xf32, #tpu.memory_space<vmem>>, vector<8x512xf32>,
    return
  }
  func.func @transform_0(%arg0: i32) -> (i32, i32) {
    %c0_i32 = arith.constant 0 : i32
    %c0_i32_0 = arith.constant 0 : i32
    %c0_i32_1 = arith.constant 0 : i32
    return %c0_i32, %c0_i32_0 : i32, i32
  }
  func.func @transform_1(%arg0: i32) -> (i32, i32) {
    %c0_i32 = arith.constant 0 : i32
    %c0_i32_0 = arith.constant 0 : i32
    return %arg0, %c0_i32 : i32, i32
  }
  func.func @transform_2(%arg0: i32) -> (i32, i32) {
    %c0_i32 = arith.constant 0 : i32
    %c0_i32_0 = arith.constant 0 : i32
    return %c0_i32, %arg0 : i32, i32
  }
}

</mosaic_0001>

<llo_original>
// kernel: distmult_forward.1
$region0: #{distmult_forward.1}
  #allocation0 [shape = 'u32[]', space=smem, size = 0x4, offset = 0x4, fixed_abs, tag = 'smem constant byte address 0x4 - core index']
  #allocation1 [shape = 'u32[144,128]{1,0:T(1,128)}', space=vmem, size = 0x12000, scoped, tag = 'internal scratch']
  %s0 = inlined_call_operand.vmem [shape: bf16[8,128], index: 0, kind: input, shape index: {}]
  %s1 = inlined_call_operand.vmem [shape: bf16[512,128], index: 1, kind: input, shape index: {}]
  %s2 = inlined_call_operand.hbm [shape: f32[8,512], index: 2, kind: output, shape index: {}]
  %s3 = sld [smem:[#allocation0]]
  $region18: #{distmult_forward.1} parent=0
    _
  %s5 = ssub.s32 1, %s3
  %s6 = scalar_select 0, %s5, %s3
  $region1: #{distmult_forward.1} parent=0
    #allocation2 [shape = 'u8[16384]{0}', space=vmem, size = 0x4000, scoped, tag = 'output window, operand 0, single buffered']
    #allocation3 [shape = 's32[1]{0}', space=sflag, size = 0x4, scoped, tag = 'scoped memory for distmult_forward.1']
    %7 = vsyncpa [#allocation3], 0
    // Predicated region
    $region2: #{distmult_forward.1} parent=1 // pred_check
      _
    $region3: #{distmult_forward.1} parent=1 // pred_check_branch
      %9 = sbr.rel (0) target = $region5
    $region4: #{distmult_forward.1} parent=1 // pred_region
      _
    $region5: #{distmult_forward.1} parent=1 // pred_fallthru
      _
    // Predicated region
    $region6: #{distmult_forward.1} parent=1 // pred_check
      _
    $region7: #{distmult_forward.1} parent=1 // pred_check_branch
      %11 = sbr.rel (0) target = $region9
    $region8: #{distmult_forward.1} parent=1 // pred_region
      _
    $region9: #{distmult_forward.1} parent=1 // pred_fallthru
      _
    %v13 = vld [vmem:[%s0] sm:$0xf]
    %v14 = vld [vmem:[%s1] sm:$0xf]
    %v15 = vld [vmem:[%s1 + $0x4] sm:$0xf]
    %v16 = vld [vmem:[%s1 + $0x8] sm:$0xf]
    %v17 = vld [vmem:[%s1 + $0xc] sm:$0xf]
    %v18 = vld [vmem:[%s1 + $0x10] sm:$0xf]
    %v19 = vld [vmem:[%s1 + $0x14] sm:$0xf]
    %v20 = vld [vmem:[%s1 + $0x18] sm:$0xf]
    %v21 = vld [vmem:[%s1 + $0x1c] sm:$0xf]
    %v22 = vld [vmem:[%s1 + $0x20] sm:$0xf]
    %v23 = vld [vmem:[%s1 + $0x24] sm:$0xf]
    %v24 = vld [vmem:[%s1 + $0x28] sm:$0xf]
    %v25 = vld [vmem:[%s1 + $0x2c] sm:$0xf]
    %v26 = vld [vmem:[%s1 + $0x30] sm:$0xf]
    %v27 = vld [vmem:[%s1 + $0x34] sm:$0xf]
    %v28 = vld [vmem:[%s1 + $0x38] sm:$0xf]
    %v29 = vld [vmem:[%s1 + $0x3c] sm:$0xf]
    %v30 = vld [vmem:[%s1 + $0x40] sm:$0xf]
    %v31 = vld [vmem:[%s1 + $0x44] sm:$0xf]
    %v32 = vld [vmem:[%s1 + $0x48] sm:$0xf]
    %v33 = vld [vmem:[%s1 + $0x4c] sm:$0xf]
    %v34 = vld [vmem:[%s1 + $0x50] sm:$0xf]
    %v35 = vld [vmem:[%s1 + $0x54] sm:$0xf]
    %v36 = vld [vmem:[%s1 + $0x58] sm:$0xf]
    %v37 = vld [vmem:[%s1 + $0x5c] sm:$0xf]
    %v38 = vld [vmem:[%s1 + $0x60] sm:$0xf]
    %v39 = vld [vmem:[%s1 + $0x64] sm:$0xf]
    %v40 = vld [vmem:[%s1 + $0x68] sm:$0xf]
    %v41 = vld [vmem:[%s1 + $0x6c] sm:$0xf]
    %v42 = vld [vmem:[%s1 + $0x70] sm:$0xf]
    %v43 = vld [vmem:[%s1 + $0x74] sm:$0xf]
    %v44 = vld [vmem:[%s1 + $0x78] sm:$0xf]
    %v45 = vld [vmem:[%s1 + $0x7c] sm:$0xf]
    %v46 = vld [vmem:[%s1 + $0x80] sm:$0xf]
    %v47 = vld [vmem:[%s1 + $0x84] sm:$0xf]
    %v48 = vld [vmem:[%s1 + $0x88] sm:$0xf]
    %v49 = vld [vmem:[%s1 + $0x8c] sm:$0xf]
    %v50 = vld [vmem:[%s1 + $0x90] sm:$0xf]
    %v51 = vld [vmem:[%s1 + $0x94] sm:$0xf]
    %v52 = vld [vmem:[%s1 + $0x98] sm:$0xf]
    %v53 = vld [vmem:[%s1 + $0x9c] sm:$0xf]
    %v54 = vld [vmem:[%s1 + $0xa0] sm:$0xf]
    %v55 = vld [vmem:[%s1 + $0xa4] sm:$0xf]
    %v56 = vld [vmem:[%s1 + $0xa8] sm:$0xf]
    %v57 = vld [vmem:[%s1 + $0xac] sm:$0xf]
    %v58 = vld [vmem:[%s1 + $0xb0] sm:$0xf]
    %v59 = vld [vmem:[%s1 + $0xb4] sm:$0xf]
    %v60 = vld [vmem:[%s1 + $0xb8] sm:$0xf]
    %v61 = vld [vmem:[%s1 + $0xbc] sm:$0xf]
    %v62 = vld [vmem:[%s1 + $0xc0] sm:$0xf]
    %v63 = vld [vmem:[%s1 + $0xc4] sm:$0xf]
    %v64 = vld [vmem:[%s1 + $0xc8] sm:$0xf]
    %v65 = vld [vmem:[%s1 + $0xcc] sm:$0xf]
    %v66 = vld [vmem:[%s1 + $0xd0] sm:$0xf]
    %v67 = vld [vmem:[%s1 + $0xd4] sm:$0xf]
    %v68 = vld [vmem:[%s1 + $0xd8] sm:$0xf]
    %v69 = vld [vmem:[%s1 + $0xdc] sm:$0xf]
    %v70 = vld [vmem:[%s1 + $0xe0] sm:$0xf]
    %v71 = vld [vmem:[%s1 + $0xe4] sm:$0xf]
    %v72 = vld [vmem:[%s1 + $0xe8] sm:$0xf]
    %v73 = vld [vmem:[%s1 + $0xec] sm:$0xf]
    %v74 = vld [vmem:[%s1 + $0xf0] sm:$0xf]
    %v75 = vld [vmem:[%s1 + $0xf4] sm:$0xf]
    %v76 = vld [vmem:[%s1 + $0xf8] sm:$0xf]
    %v77 = vld [vmem:[%s1 + $0xfc] sm:$0xf]
    %v142 = vunpack.c.l.b16 %v14
    %v143 = vunpack.c.l.b16 %v15
    %v144 = vunpack.c.l.b16 %v16
    %v145 = vunpack.c.l.b16 %v17
    %v146 = vunpack.c.l.b16 %v18
    %v147 = vunpack.c.l.b16 %v19
    %v148 = vunpack.c.l.b16 %v20
    %v149 = vunpack.c.l.b16 %v21
    %v150 = vunpack.c.l.b16 %v22
    %v151 = vunpack.c.l.b16 %v23
    %v152 = vunpack.c.l.b16 %v24
    %v153 = vunpack.c.l.b16 %v25
    %v154 = vunpack.c.l.b16 %v26
    %v155 = vunpack.c.l.b16 %v27
    %v156 = vunpack.c.l.b16 %v28
    %v157 = vunpack.c.l.b16 %v29
    %v158 = vunpack.c.l.b16 %v30
    %v159 = vunpack.c.l.b16 %v31
    %v160 = vunpack.c.l.b16 %v32
    %v161 = vunpack.c.l.b16 %v33
    %v162 = vunpack.c.l.b16 %v34
    %v163 = vunpack.c.l.b16 %v35
    %v164 = vunpack.c.l.b16 %v36
    %v165 = vunpack.c.l.b16 %v37
    %v166 = vunpack.c.l.b16 %v38
    %v167 = vunpack.c.l.b16 %v39
    %v168 = vunpack.c.l.b16 %v40
    %v169 = vunpack.c.l.b16 %v41
    %v170 = vunpack.c.l.b16 %v42
    %v171 = vunpack.c.l.b16 %v43
    %v172 = vunpack.c.l.b16 %v44
    %v173 = vunpack.c.l.b16 %v45
    %v174 = vunpack.c.l.b16 %v46
    %v175 = vunpack.c.l.b16 %v47
    %v176 = vunpack.c.l.b16 %v48
    %v177 = vunpack.c.l.b16 %v49
    %v178 = vunpack.c.l.b16 %v50
    %v179 = vunpack.c.l.b16 %v51
    %v180 = vunpack.c.l.b16 %v52
    %v181 = vunpack.c.l.b16 %v53
    %v182 = vunpack.c.l.b16 %v54
    %v183 = vunpack.c.l.b16 %v55
    %v184 = vunpack.c.l.b16 %v56
    %v185 = vunpack.c.l.b16 %v57
    %v186 = vunpack.c.l.b16 %v58
    %v187 = vunpack.c.l.b16 %v59
    %v188 = vunpack.c.l.b16 %v60
    %v189 = vunpack.c.l.b16 %v61
    %v190 = vunpack.c.l.b16 %v62
    %v191 = vunpack.c.l.b16 %v63
    %v192 = vunpack.c.l.b16 %v64
    %v193 = vunpack.c.l.b16 %v65
    %v194 = vunpack.c.l.b16 %v66
    %v195 = vunpack.c.l.b16 %v67
    %v196 = vunpack.c.l.b16 %v68
    %v197 = vunpack.c.l.b16 %v69
    %v198 = vunpack.c.l.b16 %v70
    %v199 = vunpack.c.l.b16 %v71
    %v200 = vunpack.c.l.b16 %v72
    %v201 = vunpack.c.l.b16 %v73
    %v202 = vunpack.c.l.b16 %v74
    %v203 = vunpack.c.l.b16 %v75
    %v204 = vunpack.c.l.b16 %v76
    %v205 = vunpack.c.l.b16 %v77
    %v206 = vpack.c.b16 %v143, %v142
    %v207 = vpack.c.b16 %v145, %v144
    %v208 = vpack.c.b16 %v147, %v146
    %v209 = vpack.c.b16 %v149, %v148
    %v210 = vpack.c.b16 %v151, %v150
    %v211 = vpack.c.b16 %v153, %v152
    %v212 = vpack.c.b16 %v155, %v154
    %v213 = vpack.c.b16 %v157, %v156
    %v214 = vpack.c.b16 %v159, %v158
    %v215 = vpack.c.b16 %v161, %v160
    %v216 = vpack.c.b16 %v163, %v162
    %v217 = vpack.c.b16 %v165, %v164
    %v218 = vpack.c.b16 %v167, %v166
    %v219 = vpack.c.b16 %v169, %v168
    %v220 = vpack.c.b16 %v171, %v170
    %v221 = vpack.c.b16 %v173, %v172
    %v222 = vpack.c.b16 %v175, %v174
    %v223 = vpack.c.b16 %v177, %v176
    %v224 = vpack.c.b16 %v179, %v178
    %v225 = vpack.c.b16 %v181, %v180
    %v226 = vpack.c.b16 %v183, %v182
    %v227 = vpack.c.b16 %v185, %v184
    %v228 = vpack.c.b16 %v187, %v186
    %v229 = vpack.c.b16 %v189, %v188
    %v230 = vpack.c.b16 %v191, %v190
    %v231 = vpack.c.b16 %v193, %v192
    %v232 = vpack.c.b16 %v195, %v194
    %v233 = vpack.c.b16 %v197, %v196
    %v234 = vpack.c.b16 %v199, %v198
    %v235 = vpack.c.b16 %v201, %v200
    %v236 = vpack.c.b16 %v203, %v202
    %v237 = vpack.c.b16 %v205, %v204
    %270 = vmatprep.subr.bf16.mxu0 0
    %271 = vmatpush1.bf16.xpose.msra.mxu0 %v206
    %272 = vmatprep.subr.bf16.mxu0 0
    %273 = vmatpush1.bf16.xpose.msra.mxu0 %v207
    %274 = vmatprep.subr.bf16.mxu0 0
    %275 = vmatpush1.bf16.xpose.msra.mxu0 %v208
    %276 = vmatprep.subr.bf16.mxu0 0
    %277 = vmatpush1.bf16.xpose.msra.mxu0 %v209
    %278 = vmatprep.subr.bf16.mxu0 0
    %279 = vmatpush1.bf16.xpose.msra.mxu0 %v210
    %280 = vmatprep.subr.bf16.mxu0 0
    %281 = vmatpush1.bf16.xpose.msra.mxu0 %v211
    %282 = vmatprep.subr.bf16.mxu0 0
    %283 = vmatpush1.bf16.xpose.msra.mxu0 %v212
    %284 = vmatprep.subr.bf16.mxu0 0
    %285 = vmatpush1.bf16.xpose.msra.mxu0 %v213
    %286 = vmatprep.subr.bf16.mxu0 0
    %287 = vmatpush1.bf16.xpose.msra.mxu0 %v214
    %288 = vmatprep.subr.bf16.mxu0 0
    %289 = vmatpush1.bf16.xpose.msra.mxu0 %v215
    %290 = vmatprep.subr.bf16.mxu0 0
    %291 = vmatpush1.bf16.xpose.msra.mxu0 %v216
    %292 = vmatprep.subr.bf16.mxu0 0
    %293 = vmatpush1.bf16.xpose.msra.mxu0 %v217
    %294 = vmatprep.subr.bf16.mxu0 0
    %295 = vmatpush1.bf16.xpose.msra.mxu0 %v218
    %296 = vmatprep.subr.bf16.mxu0 0
    %297 = vmatpush1.bf16.xpose.msra.mxu0 %v219
    %298 = vmatprep.subr.bf16.mxu0 0
    %299 = vmatpush1.bf16.xpose.msra.mxu0 %v220
    %300 = vmatprep.subr.bf16.mxu0 0
    %301 = vmatpush1.bf16.xpose.msra.mxu0 %v221
    %302 = vmatprep.mubr.bf16.mxu0 0
    %303 = vmatmul.mubr.bf16.gmra.mrb[0].mxu0 %v13
    %v304 = vpop.f32.mrb[0].mxu0
    %v305 = vadd.f32 0.0, %v304
    %v306 = vpop.f32.mrb[0].mxu0
    %v307 = vadd.f32 0.0, %v306
    %v308 = vpop.f32.mrb[0].mxu0
    %v309 = vpop.f32.mrb[0].mxu0
    %310 = vdwg.mxu0
    %311 = vmatprep.subr.bf16.mxu0 0
    %312 = vmatpush1.bf16.xpose.msra.mxu0 %v222
    %313 = vmatprep.subr.bf16.mxu0 0
    %314 = vmatpush1.bf16.xpose.msra.mxu0 %v223
    %315 = vmatprep.subr.bf16.mxu0 0
    %316 = vmatpush1.bf16.xpose.msra.mxu0 %v224
    %317 = vmatprep.subr.bf16.mxu0 0
    %318 = vmatpush1.bf16.xpose.msra.mxu0 %v225
    %319 = vmatprep.subr.bf16.mxu0 0
    %320 = vmatpush1.bf16.xpose.msra.mxu0 %v226
    %321 = vmatprep.subr.bf16.mxu0 0
    %322 = vmatpush1.bf16.xpose.msra.mxu0 %v227
    %323 = vmatprep.subr.bf16.mxu0 0
    %324 = vmatpush1.bf16.xpose.msra.mxu0 %v228
    %325 = vmatprep.subr.bf16.mxu0 0
    %326 = vmatpush1.bf16.xpose.msra.mxu0 %v229
    %327 = vmatprep.subr.bf16.mxu0 0
    %328 = vmatpush1.bf16.xpose.msra.mxu0 %v230
    %329 = vmatprep.subr.bf16.mxu0 0
    %330 = vmatpush1.bf16.xpose.msra.mxu0 %v231
    %331 = vmatprep.subr.bf16.mxu0 0
    %332 = vmatpush1.bf16.xpose.msra.mxu0 %v232
    %333 = vmatprep.subr.bf16.mxu0 0
    %334 = vmatpush1.bf16.xpose.msra.mxu0 %v233
    %335 = vmatprep.subr.bf16.mxu0 0
    %336 = vmatpush1.bf16.xpose.msra.mxu0 %v234
    %337 = vmatprep.subr.bf16.mxu0 0
    %338 = vmatpush1.bf16.xpose.msra.mxu0 %v235
    %339 = vmatprep.subr.bf16.mxu0 0
    %340 = vmatpush1.bf16.xpose.msra.mxu0 %v236
    %341 = vmatprep.subr.bf16.mxu0 0
    %342 = vmatpush1.bf16.xpose.msra.mxu0 %v237
    %343 = vmatprep.mubr.bf16.mxu0 0
    %344 = vmatmul.mubr.bf16.gmra.mrb[0].mxu0 %v13
    %v345 = vpop.f32.mrb[0].mxu0
    %v346 = vadd.f32 0.0, %v345
    %v347 = vpop.f32.mrb[0].mxu0
    %v348 = vadd.f32 0.0, %v347
    %v349 = vpop.f32.mrb[0].mxu0
    %v350 = vpop.f32.mrb[0].mxu0
    %351 = vdwg.mxu0
    %v352 = vxor.u32 %v305, 2147483648
    %v353 = vxor.u32 %v307, 2147483648
    %v354 = vxor.u32 %v346, 2147483648
    %v355 = vxor.u32 %v348, 2147483648
    %v356 = vmul.f32 %v352, 1.442695
    %v357 = vpow.pop %v356
    %v358 = vmul.f32 %v353, 1.442695
    %v359 = vpow.pop %v358
    %v360 = vmul.f32 %v354, 1.442695
    %v361 = vpow.pop %v360
    %v362 = vmul.f32 %v355, 1.442695
    %v363 = vpow.pop %v362
    %v364 = vadd.f32 %v357, 1.0
    %v365 = vadd.f32 %v359, 1.0
    %v366 = vadd.f32 %v361, 1.0
    %v367 = vadd.f32 %v363, 1.0
    %v368 = vrcp.pop %v364
    %v369 = vmul.f32 1.0, %v368
    %v370 = vrcp.pop %v365
    %v371 = vmul.f32 1.0, %v370
    %v372 = vrcp.pop %v366
    %v373 = vmul.f32 1.0, %v372
    %v374 = vrcp.pop %v367
    %v375 = vmul.f32 1.0, %v374
    %376 = vst [vmem:[#allocation2] sm:$0xff] %v369
    %377 = vst [vmem:[#allocation2 + $0x8] sm:$0xff] %v371
    %378 = vst [vmem:[#allocation2 + $0x10] sm:$0xff] %v373
    %379 = vst [vmem:[#allocation2 + $0x18] sm:$0xff] %v375
    // Predicated region
    $region10: #{distmult_forward.1} parent=1 // pred_check
      _
    $region11: #{distmult_forward.1} parent=1 // pred_check_branch
      %381 = sbr.rel (0) target = $region13
    $region12: #{distmult_forward.1} parent=1 // pred_region
      %s383 = ssub.s32 512, 512
      %384 = vsyncadd [#allocation3], %s383
      %s386 = sshll.u32 [#allocation2], 4
      %s387 = int_to_ptr.vmem [resolvable:$true] %s386
      %389 = dma.vmem_to_hbm [thread:$0]  %s387, 512, %s2, [#allocation3]
    $region13: #{distmult_forward.1} parent=1 // pred_fallthru
      _
    // Predicated region
    $region14: #{distmult_forward.1} parent=1 // pred_check
      _
    $region15: #{distmult_forward.1} parent=1 // pred_check_branch
      %391 = sbr.rel (0) target = $region17
    $region16: #{distmult_forward.1} parent=1 // pred_region
      %392 = dma.done [#allocation3], 512
    $region17: #{distmult_forward.1} parent=1 // pred_fallthru
      _
    %393 = vsyncpa [#allocation3], 1

</llo_original>
